<compile_context>
chip_gen: v7x
topology: tpu7x:2x2x1
jax: 0.10.0
libtpu: 0.0.40
codegen_flags: <defaults>
</compile_context>

<pallas_src>
import jax
import jax.numpy as jnp
from jax.experimental import pallas as pl
from jax.experimental.pallas import tpu as pltpu


def vhn_kernel(x_ref, w_ref, o_ref):
    # x_ref: (TM, D) block of rows, one row per (batch, channel) slice
    # w_ref: (1, D)  pre-normalized weights relu(curly_Nprime(weights)), resident
    x = x_ref[...]
    w = w_ref[...]

    # curly_N(x): per-row min/max normalization, then ReLU.
    x_min = jnp.min(x, axis=-1, keepdims=True)
    x_max = jnp.max(x, axis=-1, keepdims=True)
    inv = pl.reciprocal(x_max - x_min, approx=False)   # per-row, exact
    relu_x = jnp.maximum((x - x_min) * inv, 0.0)

    o_ref[...] = relu_x * w


def vhn_layer_forward(x, weights, tm=None):
    """x: (bz, channels, H, L, W); weights: (H, L, W). Returns float32 (bz, channels, H, L, W)."""
    bz, ch, H, L, W = x.shape
    D = H * L * W
    N = bz * ch

    x_flat = x.reshape(N, D).astype(jnp.float32)

    # Hoist grid-invariant weight normalization (relu(curly_Nprime(w))) out of the kernel.
    w = weights.astype(jnp.float32).reshape(1, D)
    w_min = jnp.min(w)
    w_max = jnp.max(w)
    relu_w = jnp.maximum((w - w_min + 1.0) / (w_max - w_min + 2.0), 0.0)

    # Choose TM: target ~4 MiB per input block (fits double-buffered in+out well
    # under the scoped-VMEM defaults on v5e/v6e/v7x), multiple of 8 sublanes.
    if tm is None:
        target_block_bytes = 4 * 1024 * 1024
        tm = max(8, min(N, target_block_bytes // (D * 4)))
    tm = max(8, (tm // 8) * 8)

    # Pad rows up to a multiple of TM (padded rows are discarded after the call).
    n_pad = -(-N // tm) * tm
    if n_pad != N:
        x_flat = jnp.pad(x_flat, ((0, n_pad - N), (0, 0)))
    grid = (n_pad // tm,)

    # Double-buffered x + out blocks, plus the resident weight row, plus headroom.
    vmem_bytes = 2 * 2 * tm * D * 4 + D * 4 + (4 << 20)
    vmem_bytes = min(max(vmem_bytes, 16 << 20), 48 << 20)

    cost = pl.CostEstimate(
        flops=5 * n_pad * D,
        transcendentals=0,
        bytes_accessed=2 * n_pad * D * 4 + D * 4,
    )

    out_flat = pl.pallas_call(
        vhn_kernel,
        out_shape=jax.ShapeDtypeStruct((n_pad, D), jnp.float32),
        grid_spec=pltpu.PrefetchScalarGridSpec(
            num_scalar_prefetch=0,
            grid=grid,
            in_specs=[
                pl.BlockSpec((tm, D), lambda n: (n, 0)),
                pl.BlockSpec((1, D), lambda n: (0, 0)),
            ],
            out_specs=pl.BlockSpec((tm, D), lambda n: (n, 0)),
        ),
        compiler_params=pltpu.CompilerParams(
            dimension_semantics=("parallel",),
            vmem_limit_bytes=vmem_bytes,
        ),
        cost_estimate=cost,
    )(x_flat, relu_w)

    return out_flat[:N].reshape(bz, ch, H, L, W)


def make_weights(H, L, W):
    # Mirrors VHNLayer.__init__: weights = min_max(torch.ones(H, L, W))
    w = jnp.ones((H, L, W), dtype=jnp.float32)
    w_min = jnp.min(w)
    w_max = jnp.max(w)
    return (w - w_min + 1.0) / (w_max - w_min + 2.0)  # == 0.5 everywhere


def vhn_reference(x, weights):
    # Pure-JAX reference mirroring the PyTorch forward.
    x = x.astype(jnp.float32)
    x_min = jnp.min(x, axis=(2, 3, 4), keepdims=True)
    x_max = jnp.max(x, axis=(2, 3, 4), keepdims=True)
    relu_x = jnp.maximum((x - x_min) / (x_max - x_min), 0.0)
    w_min = jnp.min(weights)
    w_max = jnp.max(weights)
    relu_w = jnp.maximum((weights - w_min + 1.0) / (w_max - w_min + 2.0), 0.0)
    return (relu_x * relu_w[None, None]).astype(jnp.float32)


if __name__ == "__main__":
    bz, channels, H, L, W = 2, 4, 4, 8, 16

    key = jax.random.PRNGKey(0)
    x = jax.random.normal(key, (bz, channels, H, L, W), dtype=jnp.float32)
    weights = make_weights(H, L, W)

    out = vhn_layer_forward(x, weights)
    out = jax.block_until_ready(out)

    ref = vhn_reference(x, weights)
    assert out.shape == (bz, channels, H, L, W)
    assert out.dtype == jnp.float32
    assert jnp.allclose(out, ref, atol=1e-5, rtol=1e-5), "mismatch vs reference"

    print("KERNEL_OK")
</pallas_src>

<mosaic_0001>
module attributes {stable_mosaic.version = 11 : i64} {
  func.func @vhn_kernel(%arg0: i32, %arg1: memref<8x512xf32, #tpu.memory_space<vmem>>, %arg2: memref<1x512xf32, #tpu.memory_space<vmem>>, %arg3: memref<8x512xf32, #tpu.memory_space<vmem>>) attributes {dimension_semantics = [#tpu.dimension_semantics<parallel>], iteration_bounds = array<i64: 1>, scalar_prefetch = 0 : i64, scratch_operands = 0 : i64, tpu.core_type = #tpu.core_type<tc>, window_params = [{transform_indices = @transform_0, window_bounds = array<i64: 8, 512>}, {pipeline_mode = #tpu.pipeline_mode<synchronous>, transform_indices = @transform_1, window_bounds = array<i64: 1, 512>}, {transform_indices = @transform_2, window_bounds = array<i64: 8, 512>}]} {
    %c0 = arith.constant 0 : index
    %c0_0 = arith.constant 0 : index
    %0 = vector.load %arg1[%c0, %c0_0] : memref<8x512xf32, #tpu.memory_space<vmem>>, vector<8x512xf32>
    %c0_1 = arith.constant 0 : index
    %c0_2 = arith.constant 0 : index
    %1 = vector.load %arg2[%c0_1, %c0_2] : memref<1x512xf32, #tpu.memory_space<vmem>>, vector<1x512xf32>
    %cst = arith.constant dense<0x7F800000> : vector<8xf32>
    %2 = vector.multi_reduction <minimumf>, %0, %cst [1] : vector<8x512xf32> to vector<8xf32>
    %3 = vector.shape_cast %2 : vector<8xf32> to vector<8x1xf32>
    %cst_3 = arith.constant dense<0xFF800000> : vector<8xf32>
    %4 = vector.multi_reduction <maximumf>, %0, %cst_3 [1] : vector<8x512xf32> to vector<8xf32>
    %5 = vector.shape_cast %4 : vector<8xf32> to vector<8x1xf32>
    %6 = arith.subf %5, %3 : vector<8x1xf32>
    %7 = tpu.reciprocal %6 : vector<8x1xf32> -> vector<8x1xf32>
    %8 = vector.broadcast %3 : vector<8x1xf32> to vector<8x512xf32>
    %9 = arith.subf %0, %8 : vector<8x512xf32>
    %10 = vector.broadcast %7 : vector<8x1xf32> to vector<8x512xf32>
    %11 = arith.mulf %9, %10 : vector<8x512xf32>
    %cst_4 = arith.constant 0.000000e+00 : f32
    %12 = vector.broadcast %cst_4 : f32 to vector<8x512xf32>
    %13 = arith.maximumf %11, %12 : vector<8x512xf32>
    %14 = vector.broadcast %1 : vector<1x512xf32> to vector<8x512xf32>
    %15 = arith.mulf %13, %14 : vector<8x512xf32>
    %c0_5 = arith.constant 0 : index
    %c0_6 = arith.constant 0 : index
    %16 = vector.load %arg3[%c0_5, %c0_6] : memref<8x512xf32, #tpu.memory_space<vmem>>, vector<8x512xf32>
    tpu.vector_store %arg3[%c0_5, %c0_6], %15 {strides = array<i32>} : memref<8x512xf32, #tpu.memory_space<vmem>>, vector<8x512xf32>,
    return
  }
  func.func @transform_0(%arg0: i32) -> (i32, i32) {
    %c0_i32 = arith.constant 0 : i32
    %c0_i32_0 = arith.constant 0 : i32
    return %arg0, %c0_i32 : i32, i32
  }
  func.func @transform_1(%arg0: i32) -> (i32, i32) {
    %c0_i32 = arith.constant 0 : i32
    %c0_i32_0 = arith.constant 0 : i32
    %c0_i32_1 = arith.constant 0 : i32
    return %c0_i32, %c0_i32_0 : i32, i32
  }
  func.func @transform_2(%arg0: i32) -> (i32, i32) {
    %c0_i32 = arith.constant 0 : i32
    %c0_i32_0 = arith.constant 0 : i32
    return %arg0, %c0_i32 : i32, i32
  }
}

</mosaic_0001>

<llo_original>
// kernel: tpu_custom_call.1
$region0: #{tpu_custom_call.1}
  #allocation0 [shape = 'u32[]', space=smem, size = 0x4, offset = 0x4, fixed_abs, tag = 'smem constant byte address 0x4 - core index']
  #allocation1 [shape = 'u32[144,128]{1,0:T(1,128)}', space=vmem, size = 0x12000, scoped, tag = 'internal scratch']
  %s0 = inlined_call_operand.hbm [shape: f32[8,512], index: 0, kind: input, shape index: {}]
  %s1 = inlined_call_operand.hbm [shape: f32[1,512], index: 1, kind: input, shape index: {}]
  %s2 = inlined_call_operand.hbm [shape: f32[8,512], index: 2, kind: output, shape index: {}]
  %s3 = sld [smem:[#allocation0]]
  $region26: #{tpu_custom_call.1} parent=0
    _
  %s5 = ssub.s32 1, %s3
  %s6 = scalar_select 0, %s5, %s3
  $region1: #{tpu_custom_call.1} parent=0
    #allocation2 [shape = 'u8[16384]{0}', space=vmem, size = 0x4000, scoped, tag = 'input window, operand 0, single buffered']
    #allocation3 [shape = 's32[1]{0}', space=sflag, size = 0x4, scoped, tag = 'scoped memory for tpu_custom_call.1']
    #allocation4 [shape = 's32[1]{0}', space=sflag, size = 0x4, scoped, tag = 'scoped memory for tpu_custom_call.1']
    #allocation5 [shape = 'u8[2048]{0}', space=vmem, size = 0x800, scoped, tag = 'input window, operand 1, single buffered']
    #allocation6 [shape = 's32[1]{0}', space=sflag, size = 0x4, scoped, tag = 'scoped memory for tpu_custom_call.1']
    #allocation7 [shape = 'u8[16384]{0}', space=vmem, size = 0x4000, scoped, tag = 'output window, operand 0, single buffered']
    %7 = vsyncpa [#allocation3], 0
    %8 = vsyncpa [#allocation6], 0
    %9 = vsyncpa [#allocation4], 0
    // Predicated region
    $region2: #{tpu_custom_call.1} parent=1 // pred_check
      _
    $region3: #{tpu_custom_call.1} parent=1 // pred_check_branch
      %11 = sbr.rel (0) target = $region5
    $region4: #{tpu_custom_call.1} parent=1 // pred_region
      %s13 = ssub.s32 512, 512
      %14 = vsyncadd [#allocation3], %s13
      %s16 = sshll.u32 [#allocation2], 4
      %s17 = int_to_ptr.vmem [resolvable:$true] %s16
      %19 = dma.hbm_to_vmem [thread:$0]  %s0, 512, %s17, [#allocation3]
    $region5: #{tpu_custom_call.1} parent=1 // pred_fallthru
      _
    // Predicated region
    $region6: #{tpu_custom_call.1} parent=1 // pred_check
      _
    $region7: #{tpu_custom_call.1} parent=1 // pred_check_branch
      %21 = sbr.rel (0) target = $region9
    $region8: #{tpu_custom_call.1} parent=1 // pred_region
      %s23 = ssub.s32 64, 64
      %24 = vsyncadd [#allocation6], %s23
      %s26 = sshll.u32 [#allocation5], 4
      %s27 = int_to_ptr.vmem [resolvable:$true] %s26
      %29 = dma.hbm_to_vmem [thread:$0]  %s1, 64, %s27, [#allocation6]
    $region9: #{tpu_custom_call.1} parent=1 // pred_fallthru
      _
    // Predicated region
    $region10: #{tpu_custom_call.1} parent=1 // pred_check
      _
    $region11: #{tpu_custom_call.1} parent=1 // pred_check_branch
      %31 = sbr.rel (0) target = $region13
    $region12: #{tpu_custom_call.1} parent=1 // pred_region
      %32 = dma.done [#allocation3], 512
    $region13: #{tpu_custom_call.1} parent=1 // pred_fallthru
      _
    // Predicated region
    $region14: #{tpu_custom_call.1} parent=1 // pred_check
      _
    $region15: #{tpu_custom_call.1} parent=1 // pred_check_branch
      %34 = sbr.rel (0) target = $region17
    $region16: #{tpu_custom_call.1} parent=1 // pred_region
      %35 = dma.done [#allocation6], 64
    $region17: #{tpu_custom_call.1} parent=1 // pred_fallthru
      _
    %v36 = vld [vmem:[#allocation2] sm:$0xff]
    %v37 = vld [vmem:[#allocation2 + $0x8] sm:$0xff]
    %v38 = vld [vmem:[#allocation2 + $0x10] sm:$0xff]
    %v39 = vld [vmem:[#allocation2 + $0x18] sm:$0xff]
    %v40 = vld [vmem:[#allocation5] sm:$0xf]
    %v41 = vmin.f32 %v36, %v37
    %v42 = vmin.f32 %v38, %v39
    %v43 = vmin.f32 %v41, %v42
    %44 = vmin.xlane.f32.xlu0 %v43
    %v45 = vpop.xlane.xlu0 %44
    %v46 = vmax.f32 %v36, %v37
    %v47 = vmax.f32 %v38, %v39
    %v48 = vmax.f32 %v46, %v47
    %49 = vmax.xlane.f32.xlu0 %v48
    %v50 = vpop.xlane.xlu0 %49
    %v51 = vsub.f32 %v50, %v45
    %v52 = vrcp.pop %v51
    %v53 = vsub.f32 %v36, %v45
    %v54 = vsub.f32 %v37, %v45
    %v55 = vsub.f32 %v38, %v45
    %v56 = vsub.f32 %v39, %v45
    %v57 = vmul.f32 %v53, %v52
    %v58 = vmul.f32 %v54, %v52
    %v59 = vmul.f32 %v55, %v52
    %v60 = vmul.f32 %v56, %v52
    %v61 = vmax.f32 %v57, 0.0
    %v62 = vmax.f32 %v58, 0.0
    %v63 = vmax.f32 %v59, 0.0
    %v64 = vmax.f32 %v60, 0.0
    %v66 = vlaneseq
    %v67 = vshrl.u32 %v66, 7
    %v68 = vsub.s32 0, %v67
    %v69 = vrot.slane %v40, %v68
    %v70 = vlaneseq
    %v71 = vshrl.u32 %v70, 7
    %v72 = vsub.s32 1, %v71
    %v73 = vrot.slane %v40, %v72
    %v74 = vlaneseq
    %v75 = vshrl.u32 %v74, 7
    %v76 = vsub.s32 2, %v75
    %v77 = vrot.slane %v40, %v76
    %v78 = vlaneseq
    %v79 = vshrl.u32 %v78, 7
    %v80 = vsub.s32 3, %v79
    %v81 = vrot.slane %v40, %v80
    %v86 = vmul.f32 %v61, %v69
    %v87 = vmul.f32 %v62, %v73
    %v88 = vmul.f32 %v63, %v77
    %v89 = vmul.f32 %v64, %v81
    %90 = vst [vmem:[#allocation7] sm:$0xff] %v86
    %91 = vst [vmem:[#allocation7 + $0x8] sm:$0xff] %v87
    %92 = vst [vmem:[#allocation7 + $0x10] sm:$0xff] %v88
    %93 = vst [vmem:[#allocation7 + $0x18] sm:$0xff] %v89
    // Predicated region
    $region18: #{tpu_custom_call.1} parent=1 // pred_check
      _
    $region19: #{tpu_custom_call.1} parent=1 // pred_check_branch
      %95 = sbr.rel (0) target = $region21
    $region20: #{tpu_custom_call.1} parent=1 // pred_region
      %s97 = ssub.s32 512, 512
      %98 = vsyncadd [#allocation4], %s97
      %s100 = sshll.u32 [#allocation7], 4
      %s101 = int_to_ptr.vmem [resolvable:$true] %s100
      %103 = dma.vmem_to_hbm [thread:$0]  %s101, 512, %s2, [#allocation4]
    $region21: #{tpu_custom_call.1} parent=1 // pred_fallthru
      _
    // Predicated region
    $region22: #{tpu_custom_call.1} parent=1 // pred_check
      _
    $region23: #{tpu_custom_call.1} parent=1 // pred_check_branch
      %105 = sbr.rel (0) target = $region25
    $region24: #{tpu_custom_call.1} parent=1 // pred_region
      %106 = dma.done [#allocation4], 512
    $region25: #{tpu_custom_call.1} parent=1 // pred_fallthru
      _
    %107 = vsyncpa [#allocation3], 1
    %108 = vsyncpa [#allocation6], 1
    %109 = vsyncpa [#allocation4], 1

</llo_original>
